<compile_context>
chip_gen: v7x
topology: tpu7x:2x2x1
jax: 0.10.0
libtpu: 0.0.40
codegen_flags: <defaults>
</compile_context>

<pallas_src>
import jax
import jax.numpy as jnp
from jax.experimental import pallas as pl
from jax.experimental.pallas import tpu as pltpu

# ----------------------------- configuration --------------------------------
B      = 2    # batch
T      = 16   # temporal length of the waveform
C      = 8    # feature channels produced by feature_extraction / model
NCLS   = 4    # number of classes
NMODEL = 2    # n_model == n_classifiers -> parallel branch of Blueprint
K      = 3    # conv kernel size, padding = K // 2 ("same")
HALO   = K // 2
PAD8   = 8            # sublane-aligned offset of the valid region in scratch
TPAD   = T + 2 * PAD8  # padded time extent held in VMEM scratch


# --------------------------- fused Pallas kernel -----------------------------
def blueprint_kernel(x_ref, wfe_ref, bfe_ref, wconv_ref, bconv_ref,
                     wcls_ref, bcls_ref, o_ref, xpad_s, fpad_s):
    """Entire Blueprint forward in one kernel invocation.

    x_ref     : (B, T, 1)            waveform, channels-last
    wfe_ref   : (K, 1, C)            feature_extraction conv taps
    bfe_ref   : (1, C)               feature_extraction bias
    wconv_ref : (NMODEL, K, C, C)    per-model conv weights
    bconv_ref : (NMODEL, 1, C)       per-model conv bias
    wcls_ref  : (NMODEL, C, NCLS)    per-model classifier weight
    bcls_ref  : (NMODEL, 1, NCLS)    per-model classifier bias
    o_ref     : (B, NCLS)            sum_m softmax(logits_m)
    xpad_s    : (B, TPAD, 1)  VMEM scratch — zero-padded waveform
    fpad_s    : (B, TPAD, C)  VMEM scratch — zero-padded features
    """
    # ------- feature_extraction: Conv1d(1->C, k=3, same) + ReLU (pure VPU) ---
    xpad_s[...] = jnp.zeros_like(xpad_s)
    xpad_s[:, PAD8:PAD8 + T, :] = x_ref[...]          # sublane-aligned store

    feat = jnp.zeros((B, T, C), jnp.float32)
    for k in range(K):                                 # Cin == 1: no MXU needed
        xk = xpad_s[:, PAD8 - HALO + k: PAD8 - HALO + k + T, :]   # (B, T, 1)
        feat = feat + xk * wfe_ref[k]                  # (1, C) lane-broadcast
    feat = jnp.maximum(feat + bfe_ref[...], 0.0)       # (B, T, C)

    # ------- shared zero-padded features for the per-model "same" convs ------
    fpad_s[...] = jnp.zeros_like(fpad_s)
    fpad_s[:, PAD8:PAD8 + T, :] = feat
    taps = [fpad_s[:, PAD8 - HALO + k: PAD8 - HALO + k + T, :]    # 3 x (B,T,C)
            for k in range(K)]

    inv_t = 1.0 / T
    total = jnp.zeros((B, NCLS), jnp.float32)
    for m in range(NMODEL):                            # static unroll (tiny)
        # model: Conv1d(C->C, k=3, same) + ReLU
        h = jnp.zeros((B, T, C), jnp.float32)
        for k in range(K):
            h = h + jnp.einsum("btc,cd->btd", taps[k], wconv_ref[m, k],
                               preferred_element_type=jnp.float32)
        h = jnp.maximum(h + bconv_ref[m], 0.0)

        # global average pool fused into the classifier contraction
        logits = jnp.einsum("btc,cd->bd", h, wcls_ref[m],
                            preferred_element_type=jnp.float32) * inv_t
        logits = logits + bcls_ref[m]                  # (B, NCLS)

        # nn.Softmax(dim=1) over classes
        mx = jnp.max(logits, axis=1, keepdims=True)
        e = jnp.exp(logits - mx)
        denom = jnp.sum(e, axis=1, keepdims=True)
        total = total + e * pl.reciprocal(denom, approx=True)

    o_ref[...] = total                                 # single output write


# ------------------------------ JAX wrapper ----------------------------------
@jax.jit
def blueprint_forward(wav_ncw, params):
    # NCW (B, 1, T) -> channels-last (B, T, 1): moving a size-1 axis is a pure
    # reshape (no data movement), so no wrapper-side transpose/pad ops remain.
    x = wav_ncw.reshape(B, T, 1)
    return pl.pallas_call(
        blueprint_kernel,
        out_shape=jax.ShapeDtypeStruct((B, NCLS), jnp.float32),
        grid=(1,),
        in_specs=[
            pl.BlockSpec((B, T, 1), lambda i: (0, 0, 0)),
            pl.BlockSpec((K, 1, C), lambda i: (0, 0, 0)),
            pl.BlockSpec((1, C), lambda i: (0, 0)),
            pl.BlockSpec((NMODEL, K, C, C), lambda i: (0, 0, 0, 0)),
            pl.BlockSpec((NMODEL, 1, C), lambda i: (0, 0, 0)),
            pl.BlockSpec((NMODEL, C, NCLS), lambda i: (0, 0, 0)),
            pl.BlockSpec((NMODEL, 1, NCLS), lambda i: (0, 0, 0)),
        ],
        out_specs=pl.BlockSpec((B, NCLS), lambda i: (0, 0)),
        scratch_shapes=[
            pltpu.VMEM((B, TPAD, 1), jnp.float32),   # zero-padded waveform
            pltpu.VMEM((B, TPAD, C), jnp.float32),   # zero-padded features
        ],
    )(x, params["w_fe"], params["b_fe"], params["wconv"], params["bconv"],
      params["wcls"], params["bcls"])


# --------------------------- pure-JAX reference ------------------------------
def blueprint_reference(wav_ncw, params):
    x = jnp.transpose(wav_ncw, (0, 2, 1)).astype(jnp.float32)     # (B, T, 1)
    xpad = jnp.pad(x, ((0, 0), (HALO, HALO), (0, 0)))
    feat = sum(jnp.einsum("btc,cd->btd", xpad[:, k:k + T, :],
                          params["w_fe"][k]) for k in range(K))
    feat = jnp.maximum(feat + params["b_fe"][0][None, None, :], 0.0)

    featpad = jnp.pad(feat, ((0, 0), (HALO, HALO), (0, 0)))
    total = jnp.zeros((B, NCLS), jnp.float32)
    for m in range(NMODEL):
        h = sum(jnp.einsum("btc,cd->btd", featpad[:, k:k + T, :],
                           params["wconv"][m, k]) for k in range(K))
        h = jnp.maximum(h + params["bconv"][m, 0][None, None, :], 0.0)
        p = jnp.mean(h, axis=1)
        logits = p @ params["wcls"][m] + params["bcls"][m, 0][None, :]
        total = total + jax.nn.softmax(logits, axis=1)
    return total


# --------------------------------- main ---------------------------------------
if __name__ == "__main__":
    key = jax.random.PRNGKey(0)
    k_wav, k_fe, k_fc, k_mw, k_mb, k_cw, k_cb = jax.random.split(key, 7)

    # PyTorch-style NCW waveform input: (B, Cin=1, T)
    wav = jax.random.normal(k_wav, (B, 1, T), dtype=jnp.float32)

    params = {
        # feature_extraction: Conv1d(1 -> C, k=3)
        "w_fe": 0.3 * jax.random.normal(k_fe, (K, 1, C), dtype=jnp.float32),
        "b_fe": 0.1 * jax.random.normal(k_fc, (1, C), dtype=jnp.float32),
        # per-model Conv1d(C -> C, k=3)
        "wconv": 0.2 * jax.random.normal(k_mw, (NMODEL, K, C, C),
                                         dtype=jnp.float32),
        "bconv": 0.1 * jax.random.normal(k_mb, (NMODEL, 1, C),
                                         dtype=jnp.float32),
        # per-model classifier Linear(C -> NCLS)
        "wcls": 0.2 * jax.random.normal(k_cw, (NMODEL, C, NCLS),
                                        dtype=jnp.float32),
        "bcls": 0.1 * jax.random.normal(k_cb, (NMODEL, 1, NCLS),
                                        dtype=jnp.float32),
    }

    out = blueprint_forward(wav, params)
    out = jax.block_until_ready(out)

    ref = blueprint_reference(wav, params)
    assert out.shape == (B, NCLS)
    # approx=True reciprocal in the softmax -> allow a slightly loose tolerance
    assert jnp.allclose(out, ref, rtol=2e-3, atol=2e-3), (out, ref)

    print("KERNEL_OK")
</pallas_src>

<mosaic_0001>
module attributes {stable_mosaic.version = 11 : i64} {
  func.func @blueprint_kernel(%arg0: i32, %arg1: memref<2x16x1xf32, #tpu.memory_space<vmem>>, %arg2: memref<3x1x8xf32, #tpu.memory_space<vmem>>, %arg3: memref<1x8xf32, #tpu.memory_space<vmem>>, %arg4: memref<2x3x8x8xf32, #tpu.memory_space<vmem>>, %arg5: memref<2x1x8xf32, #tpu.memory_space<vmem>>, %arg6: memref<2x8x4xf32, #tpu.memory_space<vmem>>, %arg7: memref<2x1x4xf32, #tpu.memory_space<vmem>>, %arg8: memref<2x4xf32, #tpu.memory_space<vmem>>, %arg9: memref<2x32x1xf32, #tpu.memory_space<vmem>>, %arg10: memref<2x32x8xf32, #tpu.memory_space<vmem>>) attributes {dimension_semantics = [#tpu.dimension_semantics<arbitrary>], iteration_bounds = array<i64: 1>, scalar_prefetch = 0 : i64, scratch_operands = 2 : i64, tpu.core_type = #tpu.core_type<tc>, window_params = [{pipeline_mode = #tpu.pipeline_mode<synchronous>, transform_indices = @transform_0, window_bounds = array<i64: 2, 16, 1>}, {pipeline_mode = #tpu.pipeline_mode<synchronous>, transform_indices = @transform_1, window_bounds = array<i64: 3, 1, 8>}, {pipeline_mode = #tpu.pipeline_mode<synchronous>, transform_indices = @transform_2, window_bounds = array<i64: 1, 8>}, {pipeline_mode = #tpu.pipeline_mode<synchronous>, transform_indices = @transform_3, window_bounds = array<i64: 2, 3, 8, 8>}, {pipeline_mode = #tpu.pipeline_mode<synchronous>, transform_indices = @transform_4, window_bounds = array<i64: 2, 1, 8>}, {pipeline_mode = #tpu.pipeline_mode<synchronous>, transform_indices = @transform_5, window_bounds = array<i64: 2, 8, 4>}, {pipeline_mode = #tpu.pipeline_mode<synchronous>, transform_indices = @transform_6, window_bounds = array<i64: 2, 1, 4>}, {pipeline_mode = #tpu.pipeline_mode<synchronous>, transform_indices = @transform_7, window_bounds = array<i64: 2, 4>}]} {
    %cst = arith.constant 0.000000e+00 : f32
    %0 = vector.broadcast %cst : f32 to vector<2x32x1xf32>
    %c0 = arith.constant 0 : index
    %c0_0 = arith.constant 0 : index
    %c0_1 = arith.constant 0 : index
    %1 = vector.load %arg9[%c0, %c0_0, %c0_1] : memref<2x32x1xf32, #tpu.memory_space<vmem>>, vector<2x32x1xf32>
    tpu.vector_store %arg9[%c0, %c0_0, %c0_1], %0 {strides = array<i32>} : memref<2x32x1xf32, #tpu.memory_space<vmem>>, vector<2x32x1xf32>,
    %c0_2 = arith.constant 0 : index
    %c0_3 = arith.constant 0 : index
    %c0_4 = arith.constant 0 : index
    %2 = vector.load %arg1[%c0_2, %c0_3, %c0_4] : memref<2x16x1xf32, #tpu.memory_space<vmem>>, vector<2x16x1xf32>
    %c0_5 = arith.constant 0 : index
    %c8 = arith.constant 8 : index
    %c0_6 = arith.constant 0 : index
    %3 = vector.load %arg9[%c0_5, %c8, %c0_6] : memref<2x32x1xf32, #tpu.memory_space<vmem>>, vector<2x16x1xf32>
    tpu.vector_store %arg9[%c0_5, %c8, %c0_6], %2 {strides = array<i32>} : memref<2x32x1xf32, #tpu.memory_space<vmem>>, vector<2x16x1xf32>,
    %cst_7 = arith.constant 0.000000e+00 : f32
    %4 = vector.broadcast %cst_7 : f32 to vector<2x16x8xf32>
    %c0_8 = arith.constant 0 : index
    %c7 = arith.constant 7 : index
    %c0_9 = arith.constant 0 : index
    %5 = vector.load %arg9[%c0_8, %c7, %c0_9] : memref<2x32x1xf32, #tpu.memory_space<vmem>>, vector<2x16x1xf32>
    %c0_10 = arith.constant 0 : index
    %c0_11 = arith.constant 0 : index
    %c0_12 = arith.constant 0 : index
    %6 = vector.load %arg2[%c0_10, %c0_11, %c0_12] : memref<3x1x8xf32, #tpu.memory_space<vmem>>, vector<1x1x8xf32>
    %7 = vector.shape_cast %6 : vector<1x1x8xf32> to vector<1x8xf32>
    %8 = vector.shape_cast %7 : vector<1x8xf32> to vector<1x1x8xf32>
    %9 = vector.broadcast %5 : vector<2x16x1xf32> to vector<2x16x8xf32>
    %10 = vector.broadcast %8 : vector<1x1x8xf32> to vector<2x16x8xf32>
    %11 = arith.mulf %9, %10 : vector<2x16x8xf32>
    %12 = arith.addf %4, %11 : vector<2x16x8xf32>
    %c0_13 = arith.constant 0 : index
    %c8_14 = arith.constant 8 : index
    %c0_15 = arith.constant 0 : index
    %13 = vector.load %arg9[%c0_13, %c8_14, %c0_15] : memref<2x32x1xf32, #tpu.memory_space<vmem>>, vector<2x16x1xf32>
    %c1 = arith.constant 1 : index
    %c0_16 = arith.constant 0 : index
    %c0_17 = arith.constant 0 : index
    %14 = vector.load %arg2[%c1, %c0_16, %c0_17] : memref<3x1x8xf32, #tpu.memory_space<vmem>>, vector<1x1x8xf32>
    %15 = vector.shape_cast %14 : vector<1x1x8xf32> to vector<1x8xf32>
    %16 = vector.shape_cast %15 : vector<1x8xf32> to vector<1x1x8xf32>
    %17 = vector.broadcast %13 : vector<2x16x1xf32> to vector<2x16x8xf32>
    %18 = vector.broadcast %16 : vector<1x1x8xf32> to vector<2x16x8xf32>
    %19 = arith.mulf %17, %18 : vector<2x16x8xf32>
    %20 = arith.addf %12, %19 : vector<2x16x8xf32>
    %c0_18 = arith.constant 0 : index
    %c9 = arith.constant 9 : index
    %c0_19 = arith.constant 0 : index
    %21 = vector.load %arg9[%c0_18, %c9, %c0_19] : memref<2x32x1xf32, #tpu.memory_space<vmem>>, vector<2x16x1xf32>
    %c2 = arith.constant 2 : index
    %c0_20 = arith.constant 0 : index
    %c0_21 = arith.constant 0 : index
    %22 = vector.load %arg2[%c2, %c0_20, %c0_21] : memref<3x1x8xf32, #tpu.memory_space<vmem>>, vector<1x1x8xf32>
    %23 = vector.shape_cast %22 : vector<1x1x8xf32> to vector<1x8xf32>
    %24 = vector.shape_cast %23 : vector<1x8xf32> to vector<1x1x8xf32>
    %25 = vector.broadcast %21 : vector<2x16x1xf32> to vector<2x16x8xf32>
    %26 = vector.broadcast %24 : vector<1x1x8xf32> to vector<2x16x8xf32>
    %27 = arith.mulf %25, %26 : vector<2x16x8xf32>
    %28 = arith.addf %20, %27 : vector<2x16x8xf32>
    %c0_22 = arith.constant 0 : index
    %c0_23 = arith.constant 0 : index
    %29 = vector.load %arg3[%c0_22, %c0_23] : memref<1x8xf32, #tpu.memory_space<vmem>>, vector<1x8xf32>
    %30 = vector.shape_cast %29 : vector<1x8xf32> to vector<1x1x8xf32>
    %31 = vector.broadcast %30 : vector<1x1x8xf32> to vector<2x16x8xf32>
    %32 = arith.addf %28, %31 : vector<2x16x8xf32>
    %cst_24 = arith.constant 0.000000e+00 : f32
    %33 = vector.broadcast %cst_24 : f32 to vector<2x16x8xf32>
    %34 = arith.maximumf %32, %33 : vector<2x16x8xf32>
    %cst_25 = arith.constant 0.000000e+00 : f32
    %35 = vector.broadcast %cst_25 : f32 to vector<2x32x8xf32>
    %c0_26 = arith.constant 0 : index
    %c0_27 = arith.constant 0 : index
    %c0_28 = arith.constant 0 : index
    %36 = vector.load %arg10[%c0_26, %c0_27, %c0_28] : memref<2x32x8xf32, #tpu.memory_space<vmem>>, vector<2x32x8xf32>
    tpu.vector_store %arg10[%c0_26, %c0_27, %c0_28], %35 {strides = array<i32>} : memref<2x32x8xf32, #tpu.memory_space<vmem>>, vector<2x32x8xf32>,
    %c0_29 = arith.constant 0 : index
    %c8_30 = arith.constant 8 : index
    %c0_31 = arith.constant 0 : index
    %37 = vector.load %arg10[%c0_29, %c8_30, %c0_31] : memref<2x32x8xf32, #tpu.memory_space<vmem>>, vector<2x16x8xf32>
    tpu.vector_store %arg10[%c0_29, %c8_30, %c0_31], %34 {strides = array<i32>} : memref<2x32x8xf32, #tpu.memory_space<vmem>>, vector<2x16x8xf32>,
    %c0_32 = arith.constant 0 : index
    %c7_33 = arith.constant 7 : index
    %c0_34 = arith.constant 0 : index
    %38 = vector.load %arg10[%c0_32, %c7_33, %c0_34] : memref<2x32x8xf32, #tpu.memory_space<vmem>>, vector<2x16x8xf32>
    %c0_35 = arith.constant 0 : index
    %c8_36 = arith.constant 8 : index
    %c0_37 = arith.constant 0 : index
    %39 = vector.load %arg10[%c0_35, %c8_36, %c0_37] : memref<2x32x8xf32, #tpu.memory_space<vmem>>, vector<2x16x8xf32>
    %c0_38 = arith.constant 0 : index
    %c9_39 = arith.constant 9 : index
    %c0_40 = arith.constant 0 : index
    %40 = vector.load %arg10[%c0_38, %c9_39, %c0_40] : memref<2x32x8xf32, #tpu.memory_space<vmem>>, vector<2x16x8xf32>
    %cst_41 = arith.constant 0.000000e+00 : f32
    %41 = vector.broadcast %cst_41 : f32 to vector<2x4xf32>
    %cst_42 = arith.constant 0.000000e+00 : f32
    %42 = vector.broadcast %cst_42 : f32 to vector<2x16x8xf32>
    %c0_43 = arith.constant 0 : index
    %c0_44 = arith.constant 0 : index
    %c0_45 = arith.constant 0 : index
    %c0_46 = arith.constant 0 : index
    %43 = vector.load %arg4[%c0_43, %c0_44, %c0_45, %c0_46] : memref<2x3x8x8xf32, #tpu.memory_space<vmem>>, vector<1x1x8x8xf32>
    %44 = vector.shape_cast %43 : vector<1x1x8x8xf32> to vector<8x8xf32>
    "tpu.trace_start"() <{level = 10 : i32, message = "btc,cd->btd"}> : () -> ()
    %cst_47 = arith.constant dense<0.000000e+00> : vector<2x16x8xf32>
    %45 = tpu.matmul %38, %44, %cst_47 {dimension_numbers = #tpu.dot_dimension_numbers<[2], [0], [0, 1], [1], [0, 0, 0, 1, 1, 1], [], []>} : vector<2x16x8xf32>, vector<8x8xf32>, vector<2x16x8xf32> -> vector<2x16x8xf32>
    "tpu.trace_stop"() : () -> ()
    %46 = arith.addf %42, %45 : vector<2x16x8xf32>
    %c0_48 = arith.constant 0 : index
    %c1_49 = arith.constant 1 : index
    %c0_50 = arith.constant 0 : index
    %c0_51 = arith.constant 0 : index
    %47 = vector.load %arg4[%c0_48, %c1_49, %c0_50, %c0_51] : memref<2x3x8x8xf32, #tpu.memory_space<vmem>>, vector<1x1x8x8xf32>
    %48 = vector.shape_cast %47 : vector<1x1x8x8xf32> to vector<8x8xf32>
    "tpu.trace_start"() <{level = 10 : i32, message = "btc,cd->btd"}> : () -> ()
    %cst_52 = arith.constant dense<0.000000e+00> : vector<2x16x8xf32>
    %49 = tpu.matmul %39, %48, %cst_52 {dimension_numbers = #tpu.dot_dimension_numbers<[2], [0], [0, 1], [1], [0, 0, 0, 1, 1, 1], [], []>} : vector<2x16x8xf32>, vector<8x8xf32>, vector<2x16x8xf32> -> vector<2x16x8xf32>
    "tpu.trace_stop"() : () -> ()
    %50 = arith.addf %46, %49 : vector<2x16x8xf32>
    %c0_53 = arith.constant 0 : index
    %c2_54 = arith.constant 2 : index
    %c0_55 = arith.constant 0 : index
    %c0_56 = arith.constant 0 : index
    %51 = vector.load %arg4[%c0_53, %c2_54, %c0_55, %c0_56] : memref<2x3x8x8xf32, #tpu.memory_space<vmem>>, vector<1x1x8x8xf32>
    %52 = vector.shape_cast %51 : vector<1x1x8x8xf32> to vector<8x8xf32>
    "tpu.trace_start"() <{level = 10 : i32, message = "btc,cd->btd"}> : () -> ()
    %cst_57 = arith.constant dense<0.000000e+00> : vector<2x16x8xf32>
    %53 = tpu.matmul %40, %52, %cst_57 {dimension_numbers = #tpu.dot_dimension_numbers<[2], [0], [0, 1], [1], [0, 0, 0, 1, 1, 1], [], []>} : vector<2x16x8xf32>, vector<8x8xf32>, vector<2x16x8xf32> -> vector<2x16x8xf32>
    "tpu.trace_stop"() : () -> ()
    %54 = arith.addf %50, %53 : vector<2x16x8xf32>
    %c0_58 = arith.constant 0 : index
    %c0_59 = arith.constant 0 : index
    %c0_60 = arith.constant 0 : index
    %55 = vector.load %arg5[%c0_58, %c0_59, %c0_60] : memref<2x1x8xf32, #tpu.memory_space<vmem>>, vector<1x1x8xf32>
    %56 = vector.shape_cast %55 : vector<1x1x8xf32> to vector<1x8xf32>
    %57 = vector.shape_cast %56 : vector<1x8xf32> to vector<1x1x8xf32>
    %58 = vector.broadcast %57 : vector<1x1x8xf32> to vector<2x16x8xf32>
    %59 = arith.addf %54, %58 : vector<2x16x8xf32>
    %cst_61 = arith.constant 0.000000e+00 : f32
    %60 = vector.broadcast %cst_61 : f32 to vector<2x16x8xf32>
    %61 = arith.maximumf %59, %60 : vector<2x16x8xf32>
    %c0_62 = arith.constant 0 : index
    %c0_63 = arith.constant 0 : index
    %c0_64 = arith.constant 0 : index
    %62 = vector.load %arg6[%c0_62, %c0_63, %c0_64] : memref<2x8x4xf32, #tpu.memory_space<vmem>>, vector<1x8x4xf32>
    %63 = vector.shape_cast %62 : vector<1x8x4xf32> to vector<8x4xf32>
    "tpu.trace_start"() <{level = 10 : i32, message = "btc,cd->bd"}> : () -> ()
    %cst_65 = arith.constant dense<0.000000e+00> : vector<2x8xf32>
    %64 = vector.multi_reduction <add>, %61, %cst_65 [1] : vector<2x16x8xf32> to vector<2x8xf32>
    %cst_66 = arith.constant dense<0.000000e+00> : vector<2x4xf32>
    %65 = tpu.matmul %64, %63, %cst_66 {dimension_numbers = #tpu.dot_dimension_numbers<[1], [0], [0], [1], [0, 0, 1, 1], [], []>} : vector<2x8xf32>, vector<8x4xf32>, vector<2x4xf32> -> vector<2x4xf32>
    "tpu.trace_stop"() : () -> ()
    %cst_67 = arith.constant 6.250000e-02 : f32
    %66 = vector.broadcast %cst_67 : f32 to vector<2x4xf32>
    %67 = arith.mulf %65, %66 : vector<2x4xf32>
    %c0_68 = arith.constant 0 : index
    %c0_69 = arith.constant 0 : index
    %c0_70 = arith.constant 0 : index
    %68 = vector.load %arg7[%c0_68, %c0_69, %c0_70] : memref<2x1x4xf32, #tpu.memory_space<vmem>>, vector<1x1x4xf32>
    %69 = vector.shape_cast %68 : vector<1x1x4xf32> to vector<1x4xf32>
    %70 = vector.broadcast %69 : vector<1x4xf32> to vector<2x4xf32>
    %71 = arith.addf %67, %70 : vector<2x4xf32>
    %cst_71 = arith.constant dense<0xFF800000> : vector<2xf32>
    %72 = vector.multi_reduction <maximumf>, %71, %cst_71 [1] : vector<2x4xf32> to vector<2xf32>
    %73 = vector.shape_cast %72 : vector<2xf32> to vector<2x1xf32>
    %74 = vector.broadcast %73 : vector<2x1xf32> to vector<2x4xf32>
    %75 = arith.subf %71, %74 : vector<2x4xf32>
    %76 = math.exp %75 : vector<2x4xf32>
    %cst_72 = arith.constant dense<0.000000e+00> : vector<2xf32>
    %77 = vector.multi_reduction <add>, %76, %cst_72 [1] : vector<2x4xf32> to vector<2xf32>
    %78 = vector.shape_cast %77 : vector<2xf32> to vector<2x1xf32>
    %79 = tpu.reciprocal %78 {approx = true} : vector<2x1xf32> -> vector<2x1xf32>
    %80 = vector.broadcast %79 : vector<2x1xf32> to vector<2x4xf32>
    %81 = arith.mulf %76, %80 : vector<2x4xf32>
    %82 = arith.addf %41, %81 : vector<2x4xf32>
    %cst_73 = arith.constant 0.000000e+00 : f32
    %83 = vector.broadcast %cst_73 : f32 to vector<2x16x8xf32>
    %c1_74 = arith.constant 1 : index
    %c0_75 = arith.constant 0 : index
    %c0_76 = arith.constant 0 : index
    %c0_77 = arith.constant 0 : index
    %84 = vector.load %arg4[%c1_74, %c0_75, %c0_76, %c0_77] : memref<2x3x8x8xf32, #tpu.memory_space<vmem>>, vector<1x1x8x8xf32>
    %85 = vector.shape_cast %84 : vector<1x1x8x8xf32> to vector<8x8xf32>
    "tpu.trace_start"() <{level = 10 : i32, message = "btc,cd->btd"}> : () -> ()
    %cst_78 = arith.constant dense<0.000000e+00> : vector<2x16x8xf32>
    %86 = tpu.matmul %38, %85, %cst_78 {dimension_numbers = #tpu.dot_dimension_numbers<[2], [0], [0, 1], [1], [0, 0, 0, 1, 1, 1], [], []>} : vector<2x16x8xf32>, vector<8x8xf32>, vector<2x16x8xf32> -> vector<2x16x8xf32>
    "tpu.trace_stop"() : () -> ()
    %87 = arith.addf %83, %86 : vector<2x16x8xf32>
    %c1_79 = arith.constant 1 : index
    %c1_80 = arith.constant 1 : index
    %c0_81 = arith.constant 0 : index
    %c0_82 = arith.constant 0 : index
    %88 = vector.load %arg4[%c1_79, %c1_80, %c0_81, %c0_82] : memref<2x3x8x8xf32, #tpu.memory_space<vmem>>, vector<1x1x8x8xf32>
    %89 = vector.shape_cast %88 : vector<1x1x8x8xf32> to vector<8x8xf32>
    "tpu.trace_start"() <{level = 10 : i32, message = "btc,cd->btd"}> : () -> ()
    %cst_83 = arith.constant dense<0.000000e+00> : vector<2x16x8xf32>
    %90 = tpu.matmul %39, %89, %cst_83 {dimension_numbers = #tpu.dot_dimension_numbers<[2], [0], [0, 1], [1], [0, 0, 0, 1, 1, 1], [], []>} : vector<2x16x8xf32>, vector<8x8xf32>, vector<2x16x8xf32> -> vector<2x16x8xf32>
    "tpu.trace_stop"() : () -> ()
    %91 = arith.addf %87, %90 : vector<2x16x8xf32>
    %c1_84 = arith.constant 1 : index
    %c2_85 = arith.constant 2 : index
    %c0_86 = arith.constant 0 : index
    %c0_87 = arith.constant 0 : index
    %92 = vector.load %arg4[%c1_84, %c2_85, %c0_86, %c0_87] : memref<2x3x8x8xf32, #tpu.memory_space<vmem>>, vector<1x1x8x8xf32>
    %93 = vector.shape_cast %92 : vector<1x1x8x8xf32> to vector<8x8xf32>
    "tpu.trace_start"() <{level = 10 : i32, message = "btc,cd->btd"}> : () -> ()
    %cst_88 = arith.constant dense<0.000000e+00> : vector<2x16x8xf32>
    %94 = tpu.matmul %40, %93, %cst_88 {dimension_numbers = #tpu.dot_dimension_numbers<[2], [0], [0, 1], [1], [0, 0, 0, 1, 1, 1], [], []>} : vector<2x16x8xf32>, vector<8x8xf32>, vector<2x16x8xf32> -> vector<2x16x8xf32>
    "tpu.trace_stop"() : () -> ()
    %95 = arith.addf %91, %94 : vector<2x16x8xf32>
    %c1_89 = arith.constant 1 : index
    %c0_90 = arith.constant 0 : index
    %c0_91 = arith.constant 0 : index
    %96 = vector.load %arg5[%c1_89, %c0_90, %c0_91] : memref<2x1x8xf32, #tpu.memory_space<vmem>>, vector<1x1x8xf32>
    %97 = vector.shape_cast %96 : vector<1x1x8xf32> to vector<1x8xf32>
    %98 = vector.shape_cast %97 : vector<1x8xf32> to vector<1x1x8xf32>
    %99 = vector.broadcast %98 : vector<1x1x8xf32> to vector<2x16x8xf32>
    %100 = arith.addf %95, %99 : vector<2x16x8xf32>
    %cst_92 = arith.constant 0.000000e+00 : f32
    %101 = vector.broadcast %cst_92 : f32 to vector<2x16x8xf32>
    %102 = arith.maximumf %100, %101 : vector<2x16x8xf32>
    %c1_93 = arith.constant 1 : index
    %c0_94 = arith.constant 0 : index
    %c0_95 = arith.constant 0 : index
    %103 = vector.load %arg6[%c1_93, %c0_94, %c0_95] : memref<2x8x4xf32, #tpu.memory_space<vmem>>, vector<1x8x4xf32>
    %104 = vector.shape_cast %103 : vector<1x8x4xf32> to vector<8x4xf32>
    "tpu.trace_start"() <{level = 10 : i32, message = "btc,cd->bd"}> : () -> ()
    %cst_96 = arith.constant dense<0.000000e+00> : vector<2x8xf32>
    %105 = vector.multi_reduction <add>, %102, %cst_96 [1] : vector<2x16x8xf32> to vector<2x8xf32>
    %cst_97 = arith.constant dense<0.000000e+00> : vector<2x4xf32>
    %106 = tpu.matmul %105, %104, %cst_97 {dimension_numbers = #tpu.dot_dimension_numbers<[1], [0], [0], [1], [0, 0, 1, 1], [], []>} : vector<2x8xf32>, vector<8x4xf32>, vector<2x4xf32> -> vector<2x4xf32>
    "tpu.trace_stop"() : () -> ()
    %cst_98 = arith.constant 6.250000e-02 : f32
    %107 = vector.broadcast %cst_98 : f32 to vector<2x4xf32>
    %108 = arith.mulf %106, %107 : vector<2x4xf32>
    %c1_99 = arith.constant 1 : index
    %c0_100 = arith.constant 0 : index
    %c0_101 = arith.constant 0 : index
    %109 = vector.load %arg7[%c1_99, %c0_100, %c0_101] : memref<2x1x4xf32, #tpu.memory_space<vmem>>, vector<1x1x4xf32>
    %110 = vector.shape_cast %109 : vector<1x1x4xf32> to vector<1x4xf32>
    %111 = vector.broadcast %110 : vector<1x4xf32> to vector<2x4xf32>
    %112 = arith.addf %108, %111 : vector<2x4xf32>
    %cst_102 = arith.constant dense<0xFF800000> : vector<2xf32>
    %113 = vector.multi_reduction <maximumf>, %112, %cst_102 [1] : vector<2x4xf32> to vector<2xf32>
    %114 = vector.shape_cast %113 : vector<2xf32> to vector<2x1xf32>
    %115 = vector.broadcast %114 : vector<2x1xf32> to vector<2x4xf32>
    %116 = arith.subf %112, %115 : vector<2x4xf32>
    %117 = math.exp %116 : vector<2x4xf32>
    %cst_103 = arith.constant dense<0.000000e+00> : vector<2xf32>
    %118 = vector.multi_reduction <add>, %117, %cst_103 [1] : vector<2x4xf32> to vector<2xf32>
    %119 = vector.shape_cast %118 : vector<2xf32> to vector<2x1xf32>
    %120 = tpu.reciprocal %119 {approx = true} : vector<2x1xf32> -> vector<2x1xf32>
    %121 = vector.broadcast %120 : vector<2x1xf32> to vector<2x4xf32>
    %122 = arith.mulf %117, %121 : vector<2x4xf32>
    %123 = arith.addf %82, %122 : vector<2x4xf32>
    %c0_104 = arith.constant 0 : index
    %c0_105 = arith.constant 0 : index
    %124 = vector.load %arg8[%c0_104, %c0_105] : memref<2x4xf32, #tpu.memory_space<vmem>>, vector<2x4xf32>
    tpu.vector_store %arg8[%c0_104, %c0_105], %123 {strides = array<i32>} : memref<2x4xf32, #tpu.memory_space<vmem>>, vector<2x4xf32>,
    return
  }
  func.func @transform_0(%arg0: i32) -> (i32, i32, i32) {
    %c0_i32 = arith.constant 0 : i32
    %c0_i32_0 = arith.constant 0 : i32
    %c0_i32_1 = arith.constant 0 : i32
    %c0_i32_2 = arith.constant 0 : i32
    return %c0_i32, %c0_i32_0, %c0_i32_1 : i32, i32, i32
  }
  func.func @transform_1(%arg0: i32) -> (i32, i32, i32) {
    %c0_i32 = arith.constant 0 : i32
    %c0_i32_0 = arith.constant 0 : i32
    %c0_i32_1 = arith.constant 0 : i32
    %c0_i32_2 = arith.constant 0 : i32
    return %c0_i32, %c0_i32_0, %c0_i32_1 : i32, i32, i32
  }
  func.func @transform_2(%arg0: i32) -> (i32, i32) {
    %c0_i32 = arith.constant 0 : i32
    %c0_i32_0 = arith.constant 0 : i32
    %c0_i32_1 = arith.constant 0 : i32
    return %c0_i32, %c0_i32_0 : i32, i32
  }
  func.func @transform_3(%arg0: i32) -> (i32, i32, i32, i32) {
    %c0_i32 = arith.constant 0 : i32
    %c0_i32_0 = arith.constant 0 : i32
    %c0_i32_1 = arith.constant 0 : i32
    %c0_i32_2 = arith.constant 0 : i32
    %c0_i32_3 = arith.constant 0 : i32
    return %c0_i32, %c0_i32_0, %c0_i32_1, %c0_i32_2 : i32, i32, i32, i32
  }
  func.func @transform_4(%arg0: i32) -> (i32, i32, i32) {
    %c0_i32 = arith.constant 0 : i32
    %c0_i32_0 = arith.constant 0 : i32
    %c0_i32_1 = arith.constant 0 : i32
    %c0_i32_2 = arith.constant 0 : i32
    return %c0_i32, %c0_i32_0, %c0_i32_1 : i32, i32, i32
  }
  func.func @transform_5(%arg0: i32) -> (i32, i32, i32) {
    %c0_i32 = arith.constant 0 : i32
    %c0_i32_0 = arith.constant 0 : i32
    %c0_i32_1 = arith.constant 0 : i32
    %c0_i32_2 = arith.constant 0 : i32
    return %c0_i32, %c0_i32_0, %c0_i32_1 : i32, i32, i32
  }
  func.func @transform_6(%arg0: i32) -> (i32, i32, i32) {
    %c0_i32 = arith.constant 0 : i32
    %c0_i32_0 = arith.constant 0 : i32
    %c0_i32_1 = arith.constant 0 : i32
    %c0_i32_2 = arith.constant 0 : i32
    return %c0_i32, %c0_i32_0, %c0_i32_1 : i32, i32, i32
  }
  func.func @transform_7(%arg0: i32) -> (i32, i32) {
    %c0_i32 = arith.constant 0 : i32
    %c0_i32_0 = arith.constant 0 : i32
    %c0_i32_1 = arith.constant 0 : i32
    return %c0_i32, %c0_i32_0 : i32, i32
  }
}

</mosaic_0001>

<llo_original>
// kernel: blueprint_forward.1
$region0: #{blueprint_forward.1}
  #allocation0 [shape = 'u32[]', space=smem, size = 0x4, offset = 0x4, fixed_abs, tag = 'smem constant byte address 0x4 - core index']
  #allocation1 [shape = 'u32[144,128]{1,0:T(1,128)}', space=vmem, size = 0x12000, scoped, tag = 'internal scratch']
  #allocation2 [shape = 'f32[2,32,1]{2,1,0:T(8,128)}', space=vmem, size = 0x8000, scoped, tag = 'scratch operand']
  #allocation3 [shape = 'f32[2,32,8]{2,1,0:T(8,128)}', space=vmem, size = 0x8000, scoped, tag = 'scratch operand']
  %s0 = inlined_call_operand.vmem [shape: f32[2,16,1], index: 0, kind: input, shape index: {}]
  %s1 = inlined_call_operand.vmem [shape: f32[3,1,8], index: 1, kind: input, shape index: {}]
  %s2 = inlined_call_operand.vmem [shape: f32[1,8], index: 2, kind: input, shape index: {}]
  %s3 = inlined_call_operand.vmem [shape: f32[2,3,8,8], index: 3, kind: input, shape index: {}]
  %s4 = inlined_call_operand.vmem [shape: f32[2,1,8], index: 4, kind: input, shape index: {}]
  %s5 = inlined_call_operand.vmem [shape: f32[2,8,4], index: 5, kind: input, shape index: {}]
  %s6 = inlined_call_operand.vmem [shape: f32[2,1,4], index: 6, kind: input, shape index: {}]
  %s7 = inlined_call_operand.hbm [shape: f32[2,4], index: 7, kind: output, shape index: {}]
  %s8 = sld [smem:[#allocation0]]
  $region38: #{blueprint_forward.1} parent=0
    _
  %s10 = ssub.s32 1, %s8
  %s11 = scalar_select 0, %s10, %s8
  $region1: #{blueprint_forward.1} parent=0
    #allocation4 [shape = 'u8[1024]{0}', space=vmem, size = 0x400, scoped, tag = 'output window, operand 0, single buffered']
    #allocation5 [shape = 's32[1]{0}', space=sflag, size = 0x4, scoped, tag = 'scoped memory for blueprint_forward.1']
    %12 = vsyncpa [#allocation5], 0
    // Predicated region
    $region2: #{blueprint_forward.1} parent=1 // pred_check
      _
    $region3: #{blueprint_forward.1} parent=1 // pred_check_branch
      %14 = sbr.rel (0) target = $region5
    $region4: #{blueprint_forward.1} parent=1 // pred_region
      _
    $region5: #{blueprint_forward.1} parent=1 // pred_fallthru
      _
    // Predicated region
    $region6: #{blueprint_forward.1} parent=1 // pred_check
      _
    $region7: #{blueprint_forward.1} parent=1 // pred_check_branch
      %16 = sbr.rel (0) target = $region9
    $region8: #{blueprint_forward.1} parent=1 // pred_region
      _
    $region9: #{blueprint_forward.1} parent=1 // pred_fallthru
      _
    // Predicated region
    $region10: #{blueprint_forward.1} parent=1 // pred_check
      _
    $region11: #{blueprint_forward.1} parent=1 // pred_check_branch
      %18 = sbr.rel (0) target = $region13
    $region12: #{blueprint_forward.1} parent=1 // pred_region
      _
    $region13: #{blueprint_forward.1} parent=1 // pred_fallthru
      _
    // Predicated region
    $region14: #{blueprint_forward.1} parent=1 // pred_check
      _
    $region15: #{blueprint_forward.1} parent=1 // pred_check_branch
      %20 = sbr.rel (0) target = $region17
    $region16: #{blueprint_forward.1} parent=1 // pred_region
      _
    $region17: #{blueprint_forward.1} parent=1 // pred_fallthru
      _
    // Predicated region
    $region18: #{blueprint_forward.1} parent=1 // pred_check
      _
    $region19: #{blueprint_forward.1} parent=1 // pred_check_branch
      %22 = sbr.rel (0) target = $region21
    $region20: #{blueprint_forward.1} parent=1 // pred_region
      _
    $region21: #{blueprint_forward.1} parent=1 // pred_fallthru
      _
    // Predicated region
    $region22: #{blueprint_forward.1} parent=1 // pred_check
      _
    $region23: #{blueprint_forward.1} parent=1 // pred_check_branch
      %24 = sbr.rel (0) target = $region25
    $region24: #{blueprint_forward.1} parent=1 // pred_region
      _
    $region25: #{blueprint_forward.1} parent=1 // pred_fallthru
      _
    // Predicated region
    $region26: #{blueprint_forward.1} parent=1 // pred_check
      _
    $region27: #{blueprint_forward.1} parent=1 // pred_check_branch
      %26 = sbr.rel (0) target = $region29
    $region28: #{blueprint_forward.1} parent=1 // pred_region
      _
    $region29: #{blueprint_forward.1} parent=1 // pred_fallthru
      _
    %vm27 = vcmask 7168
    %28 = vst.msk [vmem:[#allocation2] sm:$0xff] %vm27, 0.0
    %29 = vst.msk [vmem:[#allocation2 + $0x8] sm:$0xff] %vm27, 0.0
    %30 = vst.msk [vmem:[#allocation2 + $0x10] sm:$0xff] %vm27, 0.0
    %31 = vst.msk [vmem:[#allocation2 + $0x18] sm:$0xff] %vm27, 0.0
    %32 = vst.msk [vmem:[#allocation2 + $0x20] sm:$0xff] %vm27, 0.0
    %33 = vst.msk [vmem:[#allocation2 + $0x28] sm:$0xff] %vm27, 0.0
    %34 = vst.msk [vmem:[#allocation2 + $0x30] sm:$0xff] %vm27, 0.0
    %35 = vst.msk [vmem:[#allocation2 + $0x38] sm:$0xff] %vm27, 0.0
    %v36 = vld [vmem:[%s0] sm:$0xff]
    %v37 = vld [vmem:[%s0 + $0x8] sm:$0xff]
    %v38 = vld [vmem:[%s0 + $0x10] sm:$0xff]
    %v39 = vld [vmem:[%s0 + $0x18] sm:$0xff]
    %40 = vst.msk [vmem:[#allocation2 + $0x8] sm:$0xff] %vm27, %v36
    %41 = vst.msk [vmem:[#allocation2 + $0x10] sm:$0xff] %vm27, %v37
    %42 = vst.msk [vmem:[#allocation2 + $0x28] sm:$0xff] %vm27, %v38
    %43 = vst.msk [vmem:[#allocation2 + $0x30] sm:$0xff] %vm27, %v39
    %v44 = vld [vmem:[#allocation2 + $0x7] sm:$0xff]
    %v45 = vld [vmem:[#allocation2 + $0xf] sm:$0xff]
    %v46 = vld [vmem:[#allocation2 + $0x27] sm:$0xff]
    %v47 = vld [vmem:[#allocation2 + $0x2f] sm:$0xff]
    %v48 = vld [vmem:[%s1] sm:$0x1]
    %50 = vset.pattern.permute.xlu0 0
    %51 = vperm.xlu0 %50, %v44
    %v52 = vpop.permute.xlu0 %51
    %55 = vset.pattern.permute.xlu0 0
    %56 = vperm.xlu0 %55, %v45
    %v57 = vpop.permute.xlu0 %56
    %60 = vset.pattern.permute.xlu0 0
    %61 = vperm.xlu0 %60, %v46
    %v62 = vpop.permute.xlu0 %61
    %65 = vset.pattern.permute.xlu0 0
    %66 = vperm.xlu0 %65, %v47
    %v67 = vpop.permute.xlu0 %66
    %v70 = vlaneseq
    %v71 = vshrl.u32 %v70, 7
    %v72 = vsub.s32 0, %v71
    %v73 = vrot.slane %v48, %v72
    %v75 = vmul.f32 %v52, %v73
    %v76 = vmul.f32 %v57, %v73
    %v77 = vmul.f32 %v62, %v73
    %v78 = vmul.f32 %v67, %v73
    %v79 = vadd.f32 %v75, 0.0
    %v80 = vadd.f32 %v76, 0.0
    %v81 = vadd.f32 %v77, 0.0
    %v82 = vadd.f32 %v78, 0.0
    %v83 = vld [vmem:[#allocation2 + $0x8] sm:$0xff]
    %v84 = vld [vmem:[#allocation2 + $0x10] sm:$0xff]
    %v85 = vld [vmem:[#allocation2 + $0x28] sm:$0xff]
    %v86 = vld [vmem:[#allocation2 + $0x30] sm:$0xff]
    %s87 = scalar_lea.vmem %s1, 1
    %v88 = vld [vmem:[%s87] sm:$0x1]
    %90 = vset.pattern.permute.xlu0 0
    %91 = vperm.xlu0 %90, %v83
    %v92 = vpop.permute.xlu0 %91
    %95 = vset.pattern.permute.xlu0 0
    %96 = vperm.xlu0 %95, %v84
    %v97 = vpop.permute.xlu0 %96
    %100 = vset.pattern.permute.xlu0 0
    %101 = vperm.xlu0 %100, %v85
    %v102 = vpop.permute.xlu0 %101
    %105 = vset.pattern.permute.xlu0 0
    %106 = vperm.xlu0 %105, %v86
    %v107 = vpop.permute.xlu0 %106
    %v110 = vlaneseq
    %v111 = vshrl.u32 %v110, 7
    %v112 = vsub.s32 0, %v111
    %v113 = vrot.slane %v88, %v112
    %v115 = vmul.f32 %v92, %v113
    %v116 = vmul.f32 %v97, %v113
    %v117 = vmul.f32 %v102, %v113
    %v118 = vmul.f32 %v107, %v113
    %v119 = vadd.f32 %v79, %v115
    %v120 = vadd.f32 %v80, %v116
    %v121 = vadd.f32 %v81, %v117
    %v122 = vadd.f32 %v82, %v118
    %v123 = vld [vmem:[#allocation2 + $0x9] sm:$0xff]
    %v124 = vld [vmem:[#allocation2 + $0x11] sm:$0xff]
    %v125 = vld [vmem:[#allocation2 + $0x29] sm:$0xff]
    %v126 = vld [vmem:[#allocation2 + $0x31] sm:$0xff]
    %s127 = scalar_lea.vmem %s1, 2
    %v128 = vld [vmem:[%s127] sm:$0x1]
    %130 = vset.pattern.permute.xlu0 0
    %131 = vperm.xlu0 %130, %v123
    %v132 = vpop.permute.xlu0 %131
    %135 = vset.pattern.permute.xlu0 0
    %136 = vperm.xlu0 %135, %v124
    %v137 = vpop.permute.xlu0 %136
    %140 = vset.pattern.permute.xlu0 0
    %141 = vperm.xlu0 %140, %v125
    %v142 = vpop.permute.xlu0 %141
    %145 = vset.pattern.permute.xlu0 0
    %146 = vperm.xlu0 %145, %v126
    %v147 = vpop.permute.xlu0 %146
    %v150 = vlaneseq
    %v151 = vshrl.u32 %v150, 7
    %v152 = vsub.s32 0, %v151
    %v153 = vrot.slane %v128, %v152
    %v155 = vmul.f32 %v132, %v153
    %v156 = vmul.f32 %v137, %v153
    %v157 = vmul.f32 %v142, %v153
    %v158 = vmul.f32 %v147, %v153
    %v159 = vadd.f32 %v119, %v155
    %v160 = vadd.f32 %v120, %v156
    %v161 = vadd.f32 %v121, %v157
    %v162 = vadd.f32 %v122, %v158
    %v163 = vld [vmem:[%s2] sm:$0x1]
    %v165 = vlaneseq
    %v166 = vshrl.u32 %v165, 7
    %v167 = vsub.s32 0, %v166
    %v168 = vrot.slane %v163, %v167
    %v170 = vadd.f32 %v159, %v168
    %v171 = vadd.f32 %v160, %v168
    %v172 = vadd.f32 %v161, %v168
    %v173 = vadd.f32 %v162, %v168
    %v174 = vmax.f32 %v170, 0.0
    %v175 = vmax.f32 %v171, 0.0
    %v176 = vmax.f32 %v172, 0.0
    %v177 = vmax.f32 %v173, 0.0
    %vm178 = vcmask 64512
    %179 = vst.msk [vmem:[#allocation3] sm:$0xff] %vm178, 0.0
    %180 = vst.msk [vmem:[#allocation3 + $0x8] sm:$0xff] %vm178, 0.0
    %181 = vst.msk [vmem:[#allocation3 + $0x10] sm:$0xff] %vm178, 0.0
    %182 = vst.msk [vmem:[#allocation3 + $0x18] sm:$0xff] %vm178, 0.0
    %183 = vst.msk [vmem:[#allocation3 + $0x20] sm:$0xff] %vm178, 0.0
    %184 = vst.msk [vmem:[#allocation3 + $0x28] sm:$0xff] %vm178, 0.0
    %185 = vst.msk [vmem:[#allocation3 + $0x30] sm:$0xff] %vm178, 0.0
    %186 = vst.msk [vmem:[#allocation3 + $0x38] sm:$0xff] %vm178, 0.0
    %187 = vst.msk [vmem:[#allocation3 + $0x8] sm:$0xff] %vm178, %v174
    %188 = vst.msk [vmem:[#allocation3 + $0x10] sm:$0xff] %vm178, %v175
    %189 = vst.msk [vmem:[#allocation3 + $0x28] sm:$0xff] %vm178, %v176
    %190 = vst.msk [vmem:[#allocation3 + $0x30] sm:$0xff] %vm178, %v177
    %v191 = vld [vmem:[#allocation3 + $0x7] sm:$0xff]
    %v192 = vld [vmem:[#allocation3 + $0xf] sm:$0xff]
    %v193 = vld [vmem:[#allocation3 + $0x27] sm:$0xff]
    %v194 = vld [vmem:[#allocation3 + $0x2f] sm:$0xff]
    %v195 = vld [vmem:[#allocation3 + $0x8] sm:$0xff]
    %v196 = vld [vmem:[#allocation3 + $0x10] sm:$0xff]
    %v197 = vld [vmem:[#allocation3 + $0x28] sm:$0xff]
    %v198 = vld [vmem:[#allocation3 + $0x30] sm:$0xff]
    %v199 = vld [vmem:[#allocation3 + $0x9] sm:$0xff]
    %v200 = vld [vmem:[#allocation3 + $0x11] sm:$0xff]
    %v201 = vld [vmem:[#allocation3 + $0x29] sm:$0xff]
    %v202 = vld [vmem:[#allocation3 + $0x31] sm:$0xff]
    %v203 = vld [vmem:[%s3] sm:$0xff]
    %s204 = scalar_lea.vmem %s3, 8
    %v205 = vld [vmem:[%s204] sm:$0xff]
    %v207 = vsel %vm178, %v195, 0
    %v210 = vsel %vm178, %v196, 0
    %v213 = vsel %vm178, %v197, 0
    %v216 = vsel %vm178, %v198, 0
    %218 = vmatprep.subr.mxu0 0.0
    %219 = vmatpush1.msra.mxu0 %v205
    %220 = vmatprep.subr.mxu0 0.0
    %221 = vmatpush1.msra.mxu0 0.0
    %222 = vmatprep.subr.mxu0 0.0
    %223 = vmatpush1.msra.mxu0 0.0
    %224 = vmatprep.subr.mxu0 0.0
    %225 = vmatpush1.msra.mxu0 0.0
    %226 = vmatprep.subr.mxu0 0.0
    %227 = vmatpush1.msra.mxu0 0.0
    %228 = vmatprep.subr.mxu0 0.0
    %229 = vmatpush1.msra.mxu0 0.0
    %230 = vmatprep.subr.mxu0 0.0
    %231 = vmatpush1.msra.mxu0 0.0
    %232 = vmatprep.subr.mxu0 0.0
    %233 = vmatpush1.msra.mxu0 0.0
    %234 = vmatprep.subr.mxu0 0.0
    %235 = vmatpush1.msra.mxu0 0.0
    %236 = vmatprep.subr.mxu0 0.0
    %237 = vmatpush1.msra.mxu0 0.0
    %238 = vmatprep.subr.mxu0 0.0
    %239 = vmatpush1.msra.mxu0 0.0
    %240 = vmatprep.subr.mxu0 0.0
    %241 = vmatpush1.msra.mxu0 0.0
    %242 = vmatprep.subr.mxu0 0.0
    %243 = vmatpush1.msra.mxu0 0.0
    %244 = vmatprep.subr.mxu0 0.0
    %245 = vmatpush1.msra.mxu0 0.0
    %246 = vmatprep.subr.mxu0 0.0
    %247 = vmatpush1.msra.mxu0 0.0
    %248 = vmatprep.subr.mxu0 0.0
    %249 = vmatpush1.msra.mxu0 0.0
    %250 = vmatprep.subr.mxu0 0.0
    %251 = vmatpush1.msra.mxu0 0.0
    %252 = vmatprep.subr.mxu0 0.0
    %253 = vmatpush1.msra.mxu0 0.0
    %254 = vmatprep.subr.mxu0 0.0
    %255 = vmatpush1.msra.mxu0 0.0
    %256 = vmatprep.subr.mxu0 0.0
    %257 = vmatpush1.msra.mxu0 0.0
    %258 = vmatprep.subr.mxu0 0.0
    %259 = vmatpush1.msra.mxu0 0.0
    %260 = vmatprep.subr.mxu0 0.0
    %261 = vmatpush1.msra.mxu0 0.0
    %262 = vmatprep.subr.mxu0 0.0
    %263 = vmatpush1.msra.mxu0 0.0
    %264 = vmatprep.subr.mxu0 0.0
    %265 = vmatpush1.msra.mxu0 0.0
    %266 = vmatprep.subr.mxu0 0.0
    %267 = vmatpush1.msra.mxu0 0.0
    %268 = vmatprep.subr.mxu0 0.0
    %269 = vmatpush1.msra.mxu0 0.0
    %270 = vmatprep.subr.mxu0 0.0
    %271 = vmatpush1.msra.mxu0 0.0
    %272 = vmatprep.subr.mxu0 0.0
    %273 = vmatpush1.msra.mxu0 0.0
    %274 = vmatprep.subr.mxu0 0.0
    %275 = vmatpush1.msra.mxu0 0.0
    %276 = vmatprep.subr.mxu0 0.0
    %277 = vmatpush1.msra.mxu0 0.0
    %278 = vmatprep.subr.mxu0 0.0
    %279 = vmatpush1.msra.mxu0 0.0
    %280 = vmatprep.subr.mxu0 0.0
    %281 = vmatpush1.msra.mxu0 0.0
    %282 = vmatprep.mubr.f32.mxu0 0.0
    %283 = vmatmul.mubr.f32.gmra.mrb[0].mxu0 %v207
    %v284 = vpop.f32.mrb[0].mxu0
    %v285 = vadd.f32 0.0, %v284
    %v286 = vpop.f32.mrb[0].mxu0
    %287 = vmatprep.mubr.f32.mxu0 0.0
    %288 = vmatmul.mubr.f32.gmra.mrb[0].mxu0 %v210
    %v289 = vpop.f32.mrb[0].mxu0
    %v290 = vadd.f32 0.0, %v289
    %v291 = vpop.f32.mrb[0].mxu0
    %292 = vmatprep.mubr.f32.mxu0 0.0
    %293 = vmatmul.mubr.f32.gmra.mrb[0].mxu0 %v213
    %v294 = vpop.f32.mrb[0].mxu0
    %v295 = vadd.f32 0.0, %v294
    %v296 = vpop.f32.mrb[0].mxu0
    %297 = vmatprep.mubr.f32.mxu0 0.0
    %298 = vmatmul.mubr.f32.gmra.mrb[0].mxu0 %v216
    %v299 = vpop.f32.mrb[0].mxu0
    %v300 = vadd.f32 0.0, %v299
    %v301 = vpop.f32.mrb[0].mxu0
    %302 = vdwg.mxu0
    %v304 = vsel %vm178, %v191, 0
    %v307 = vsel %vm178, %v192, 0
    %v310 = vsel %vm178, %v193, 0
    %v313 = vsel %vm178, %v194, 0
    %315 = vmatprep.subr.mxu0 0.0
    %316 = vmatpush1.msra.mxu0 %v203
    %317 = vmatprep.subr.mxu0 0.0
    %318 = vmatpush1.msra.mxu0 0.0
    %319 = vmatprep.subr.mxu0 0.0
    %320 = vmatpush1.msra.mxu0 0.0
    %321 = vmatprep.subr.mxu0 0.0
    %322 = vmatpush1.msra.mxu0 0.0
    %323 = vmatprep.subr.mxu0 0.0
    %324 = vmatpush1.msra.mxu0 0.0
    %325 = vmatprep.subr.mxu0 0.0
    %326 = vmatpush1.msra.mxu0 0.0
    %327 = vmatprep.subr.mxu0 0.0
    %328 = vmatpush1.msra.mxu0 0.0
    %329 = vmatprep.subr.mxu0 0.0
    %330 = vmatpush1.msra.mxu0 0.0
    %331 = vmatprep.subr.mxu0 0.0
    %332 = vmatpush1.msra.mxu0 0.0
    %333 = vmatprep.subr.mxu0 0.0
    %334 = vmatpush1.msra.mxu0 0.0
    %335 = vmatprep.subr.mxu0 0.0
    %336 = vmatpush1.msra.mxu0 0.0
    %337 = vmatprep.subr.mxu0 0.0
    %338 = vmatpush1.msra.mxu0 0.0
    %339 = vmatprep.subr.mxu0 0.0
    %340 = vmatpush1.msra.mxu0 0.0
    %341 = vmatprep.subr.mxu0 0.0
    %342 = vmatpush1.msra.mxu0 0.0
    %343 = vmatprep.subr.mxu0 0.0
    %344 = vmatpush1.msra.mxu0 0.0
    %345 = vmatprep.subr.mxu0 0.0
    %346 = vmatpush1.msra.mxu0 0.0
    %347 = vmatprep.subr.mxu0 0.0
    %348 = vmatpush1.msra.mxu0 0.0
    %349 = vmatprep.subr.mxu0 0.0
    %350 = vmatpush1.msra.mxu0 0.0
    %351 = vmatprep.subr.mxu0 0.0
    %352 = vmatpush1.msra.mxu0 0.0
    %353 = vmatprep.subr.mxu0 0.0
    %354 = vmatpush1.msra.mxu0 0.0
    %355 = vmatprep.subr.mxu0 0.0
    %356 = vmatpush1.msra.mxu0 0.0
    %357 = vmatprep.subr.mxu0 0.0
    %358 = vmatpush1.msra.mxu0 0.0
    %359 = vmatprep.subr.mxu0 0.0
    %360 = vmatpush1.msra.mxu0 0.0
    %361 = vmatprep.subr.mxu0 0.0
    %362 = vmatpush1.msra.mxu0 0.0
    %363 = vmatprep.subr.mxu0 0.0
    %364 = vmatpush1.msra.mxu0 0.0
    %365 = vmatprep.subr.mxu0 0.0
    %366 = vmatpush1.msra.mxu0 0.0
    %367 = vmatprep.subr.mxu0 0.0
    %368 = vmatpush1.msra.mxu0 0.0
    %369 = vmatprep.subr.mxu0 0.0
    %370 = vmatpush1.msra.mxu0 0.0
    %371 = vmatprep.subr.mxu0 0.0
    %372 = vmatpush1.msra.mxu0 0.0
    %373 = vmatprep.subr.mxu0 0.0
    %374 = vmatpush1.msra.mxu0 0.0
    %375 = vmatprep.subr.mxu0 0.0
    %376 = vmatpush1.msra.mxu0 0.0
    %377 = vmatprep.subr.mxu0 0.0
    %378 = vmatpush1.msra.mxu0 0.0
    %379 = vmatprep.mubr.f32.mxu0 0.0
    %380 = vmatmul.mubr.f32.gmra.mrb[0].mxu0 %v304
    %v381 = vpop.f32.mrb[0].mxu0
    %v382 = vadd.f32 %v285, %v381
    %v383 = vpop.f32.mrb[0].mxu0
    %384 = vmatprep.mubr.f32.mxu0 0.0
    %385 = vmatmul.mubr.f32.gmra.mrb[0].mxu0 %v307
    %v386 = vpop.f32.mrb[0].mxu0
    %v387 = vadd.f32 %v290, %v386
    %v388 = vpop.f32.mrb[0].mxu0
    %389 = vmatprep.mubr.f32.mxu0 0.0
    %390 = vmatmul.mubr.f32.gmra.mrb[0].mxu0 %v310
    %v391 = vpop.f32.mrb[0].mxu0
    %v392 = vadd.f32 %v295, %v391
    %v393 = vpop.f32.mrb[0].mxu0
    %394 = vmatprep.mubr.f32.mxu0 0.0
    %395 = vmatmul.mubr.f32.gmra.mrb[0].mxu0 %v313
    %v396 = vpop.f32.mrb[0].mxu0
    %v397 = vadd.f32 %v300, %v396
    %v398 = vpop.f32.mrb[0].mxu0
    %399 = vdwg.mxu0
    %s400 = scalar_lea.vmem %s3, 16
    %v401 = vld [vmem:[%s400] sm:$0xff]
    %v403 = vsel %vm178, %v199, 0
    %v406 = vsel %vm178, %v200, 0
    %v409 = vsel %vm178, %v201, 0
    %v412 = vsel %vm178, %v202, 0
    %414 = vmatprep.subr.mxu0 0.0
    %415 = vmatpush1.msra.mxu0 %v401
    %416 = vmatprep.subr.mxu0 0.0
    %417 = vmatpush1.msra.mxu0 0.0
    %418 = vmatprep.subr.mxu0 0.0
    %419 = vmatpush1.msra.mxu0 0.0
    %420 = vmatprep.subr.mxu0 0.0
    %421 = vmatpush1.msra.mxu0 0.0
    %422 = vmatprep.subr.mxu0 0.0
    %423 = vmatpush1.msra.mxu0 0.0
    %424 = vmatprep.subr.mxu0 0.0
    %425 = vmatpush1.msra.mxu0 0.0
    %426 = vmatprep.subr.mxu0 0.0
    %427 = vmatpush1.msra.mxu0 0.0
    %428 = vmatprep.subr.mxu0 0.0
    %429 = vmatpush1.msra.mxu0 0.0
    %430 = vmatprep.subr.mxu0 0.0
    %431 = vmatpush1.msra.mxu0 0.0
    %432 = vmatprep.subr.mxu0 0.0
    %433 = vmatpush1.msra.mxu0 0.0
    %434 = vmatprep.subr.mxu0 0.0
    %435 = vmatpush1.msra.mxu0 0.0
    %436 = vmatprep.subr.mxu0 0.0
    %437 = vmatpush1.msra.mxu0 0.0
    %438 = vmatprep.subr.mxu0 0.0
    %439 = vmatpush1.msra.mxu0 0.0
    %440 = vmatprep.subr.mxu0 0.0
    %441 = vmatpush1.msra.mxu0 0.0
    %442 = vmatprep.subr.mxu0 0.0
    %443 = vmatpush1.msra.mxu0 0.0
    %444 = vmatprep.subr.mxu0 0.0
    %445 = vmatpush1.msra.mxu0 0.0
    %446 = vmatprep.subr.mxu0 0.0
    %447 = vmatpush1.msra.mxu0 0.0
    %448 = vmatprep.subr.mxu0 0.0
    %449 = vmatpush1.msra.mxu0 0.0
    %450 = vmatprep.subr.mxu0 0.0
    %451 = vmatpush1.msra.mxu0 0.0
    %452 = vmatprep.subr.mxu0 0.0
    %453 = vmatpush1.msra.mxu0 0.0
    %454 = vmatprep.subr.mxu0 0.0
    %455 = vmatpush1.msra.mxu0 0.0
    %456 = vmatprep.subr.mxu0 0.0
    %457 = vmatpush1.msra.mxu0 0.0
    %458 = vmatprep.subr.mxu0 0.0
    %459 = vmatpush1.msra.mxu0 0.0
    %460 = vmatprep.subr.mxu0 0.0
    %461 = vmatpush1.msra.mxu0 0.0
    %462 = vmatprep.subr.mxu0 0.0
    %463 = vmatpush1.msra.mxu0 0.0
    %464 = vmatprep.subr.mxu0 0.0
    %465 = vmatpush1.msra.mxu0 0.0
    %466 = vmatprep.subr.mxu0 0.0
    %467 = vmatpush1.msra.mxu0 0.0
    %468 = vmatprep.subr.mxu0 0.0
    %469 = vmatpush1.msra.mxu0 0.0
    %470 = vmatprep.subr.mxu0 0.0
    %471 = vmatpush1.msra.mxu0 0.0
    %472 = vmatprep.subr.mxu0 0.0
    %473 = vmatpush1.msra.mxu0 0.0
    %474 = vmatprep.subr.mxu0 0.0
    %475 = vmatpush1.msra.mxu0 0.0
    %476 = vmatprep.subr.mxu0 0.0
    %477 = vmatpush1.msra.mxu0 0.0
    %478 = vmatprep.mubr.f32.mxu0 0.0
    %479 = vmatmul.mubr.f32.gmra.mrb[0].mxu0 %v403
    %v480 = vpop.f32.mrb[0].mxu0
    %v481 = vadd.f32 0.0, %v480
    %v482 = vpop.f32.mrb[0].mxu0
    %483 = vmatprep.mubr.f32.mxu0 0.0
    %484 = vmatmul.mubr.f32.gmra.mrb[0].mxu0 %v406
    %v485 = vpop.f32.mrb[0].mxu0
    %v486 = vadd.f32 0.0, %v485
    %v487 = vpop.f32.mrb[0].mxu0
    %488 = vmatprep.mubr.f32.mxu0 0.0
    %489 = vmatmul.mubr.f32.gmra.mrb[0].mxu0 %v409
    %v490 = vpop.f32.mrb[0].mxu0
    %v491 = vadd.f32 0.0, %v490
    %v492 = vpop.f32.mrb[0].mxu0
    %493 = vmatprep.mubr.f32.mxu0 0.0
    %494 = vmatmul.mubr.f32.gmra.mrb[0].mxu0 %v412
    %v495 = vpop.f32.mrb[0].mxu0
    %v496 = vadd.f32 0.0, %v495
    %v497 = vpop.f32.mrb[0].mxu0
    %498 = vdwg.mxu0
    %v499 = vadd.f32 %v382, %v481
    %v500 = vadd.f32 %v387, %v486
    %v501 = vadd.f32 %v392, %v491
    %v502 = vadd.f32 %v397, %v496
    %v503 = vld [vmem:[%s4] sm:$0x1]
    %v505 = vlaneseq
    %v506 = vshrl.u32 %v505, 7
    %v507 = vsub.s32 0, %v506
    %v508 = vrot.slane %v503, %v507
    %v510 = vadd.f32 %v499, %v508
    %v511 = vadd.f32 %v500, %v508
    %v512 = vadd.f32 %v501, %v508
    %v513 = vadd.f32 %v502, %v508
    %v514 = vmax.f32 %v510, 0.0
    %v515 = vmax.f32 %v511, 0.0
    %v516 = vmax.f32 %v512, 0.0
    %v517 = vmax.f32 %v513, 0.0
    %v518 = vld [vmem:[%s5] sm:$0xff]
    %v519 = vsel %vm178, %v514, 0.0
    %v520 = vsel %vm178, %v515, 0.0
    %v521 = vadd.f32 %v519, %v520
    %v522 = vrot.slane %v521, 4
    %v523 = vadd.f32 %v521, %v522
    %v524 = vrot.slane %v523, 2
    %v525 = vadd.f32 %v523, %v524
    %v526 = vrot.slane %v525, 1
    %v527 = vadd.f32 %v525, %v526
    %v528 = vsel %vm178, %v516, 0.0
    %v529 = vsel %vm178, %v517, 0.0
    %v530 = vadd.f32 %v528, %v529
    %v531 = vrot.slane %v530, 4
    %v532 = vadd.f32 %v530, %v531
    %v533 = vrot.slane %v532, 2
    %v534 = vadd.f32 %v532, %v533
    %v535 = vrot.slane %v534, 1
    %v536 = vadd.f32 %v534, %v535
    %vm539 = vcmask 1041409
    %v540 = vsel %vm539, %v536, %v527
    %v541 = vsel %vm178, %v540, 0
    %543 = vmatprep.subr.mxu0 0.0
    %544 = vmatpush1.msra.mxu0 %v518
    %545 = vmatprep.subr.mxu0 0.0
    %546 = vmatpush1.msra.mxu0 0.0
    %547 = vmatprep.subr.mxu0 0.0
    %548 = vmatpush1.msra.mxu0 0.0
    %549 = vmatprep.subr.mxu0 0.0
    %550 = vmatpush1.msra.mxu0 0.0
    %551 = vmatprep.subr.mxu0 0.0
    %552 = vmatpush1.msra.mxu0 0.0
    %553 = vmatprep.subr.mxu0 0.0
    %554 = vmatpush1.msra.mxu0 0.0
    %555 = vmatprep.subr.mxu0 0.0
    %556 = vmatpush1.msra.mxu0 0.0
    %557 = vmatprep.subr.mxu0 0.0
    %558 = vmatpush1.msra.mxu0 0.0
    %559 = vmatprep.subr.mxu0 0.0
    %560 = vmatpush1.msra.mxu0 0.0
    %561 = vmatprep.subr.mxu0 0.0
    %562 = vmatpush1.msra.mxu0 0.0
    %563 = vmatprep.subr.mxu0 0.0
    %564 = vmatpush1.msra.mxu0 0.0
    %565 = vmatprep.subr.mxu0 0.0
    %566 = vmatpush1.msra.mxu0 0.0
    %567 = vmatprep.subr.mxu0 0.0
    %568 = vmatpush1.msra.mxu0 0.0
    %569 = vmatprep.subr.mxu0 0.0
    %570 = vmatpush1.msra.mxu0 0.0
    %571 = vmatprep.subr.mxu0 0.0
    %572 = vmatpush1.msra.mxu0 0.0
    %573 = vmatprep.subr.mxu0 0.0
    %574 = vmatpush1.msra.mxu0 0.0
    %575 = vmatprep.subr.mxu0 0.0
    %576 = vmatpush1.msra.mxu0 0.0
    %577 = vmatprep.subr.mxu0 0.0
    %578 = vmatpush1.msra.mxu0 0.0
    %579 = vmatprep.subr.mxu0 0.0
    %580 = vmatpush1.msra.mxu0 0.0
    %581 = vmatprep.subr.mxu0 0.0
    %582 = vmatpush1.msra.mxu0 0.0
    %583 = vmatprep.subr.mxu0 0.0
    %584 = vmatpush1.msra.mxu0 0.0
    %585 = vmatprep.subr.mxu0 0.0
    %586 = vmatpush1.msra.mxu0 0.0
    %587 = vmatprep.subr.mxu0 0.0
    %588 = vmatpush1.msra.mxu0 0.0
    %589 = vmatprep.subr.mxu0 0.0
    %590 = vmatpush1.msra.mxu0 0.0
    %591 = vmatprep.subr.mxu0 0.0
    %592 = vmatpush1.msra.mxu0 0.0
    %593 = vmatprep.subr.mxu0 0.0
    %594 = vmatpush1.msra.mxu0 0.0
    %595 = vmatprep.subr.mxu0 0.0
    %596 = vmatpush1.msra.mxu0 0.0
    %597 = vmatprep.subr.mxu0 0.0
    %598 = vmatpush1.msra.mxu0 0.0
    %599 = vmatprep.subr.mxu0 0.0
    %600 = vmatpush1.msra.mxu0 0.0
    %601 = vmatprep.subr.mxu0 0.0
    %602 = vmatpush1.msra.mxu0 0.0
    %603 = vmatprep.subr.mxu0 0.0
    %604 = vmatpush1.msra.mxu0 0.0
    %605 = vmatprep.subr.mxu0 0.0
    %606 = vmatpush1.msra.mxu0 0.0
    %607 = vmatprep.mubr.f32.mxu0 0.0
    %608 = vmatmul.mubr.f32.gmra.mrb[0].mxu0 %v541
    %v609 = vpop.f32.mrb[0].mxu0
    %v610 = vadd.f32 0.0, %v609
    %v611 = vpop.f32.mrb[0].mxu0
    %612 = vdwg.mxu0
    %v613 = vmul.f32 %v610, 0.0625
    %v614 = vld [vmem:[%s6] sm:$0x1]
    %v616 = vlaneseq
    %v617 = vshrl.u32 %v616, 7
    %v618 = vsub.s32 0, %v617
    %v619 = vrot.slane %v614, %v618
    %v621 = vadd.f32 %v613, %v619
    %vm622 = vcmask 25600
    %v623 = vsel %vm622, %v621, -inf
    %624 = vmax.xlane.f32.xlu0 %v623
    %v625 = vpop.xlane.xlu0 %624
    %v626 = vsub.f32 %v621, %v625
    %v627 = vmul.f32 %v626, 1.442695
    %v628 = vpow.pop %v627
    %v629 = vsel %vm622, %v628, 0.0
    %630 = vadd.xlane.f32.xlu0 %v629
    %v631 = vpop.xlane.xlu0 %630
    %v632 = vrcp.pop %v631
    %v633 = vmul.f32 %v628, %v632
    %v634 = vadd.f32 %v633, 0.0
    %s635 = scalar_lea.vmem %s3, 24
    %v636 = vld [vmem:[%s635] sm:$0xff]
    %s637 = scalar_lea.vmem %s3, 32
    %v638 = vld [vmem:[%s637] sm:$0xff]
    %639 = vmatprep.subr.mxu0 0.0
    %640 = vmatpush1.msra.mxu0 %v638
    %641 = vmatprep.subr.mxu0 0.0
    %642 = vmatpush1.msra.mxu0 0.0
    %643 = vmatprep.subr.mxu0 0.0
    %644 = vmatpush1.msra.mxu0 0.0
    %645 = vmatprep.subr.mxu0 0.0
    %646 = vmatpush1.msra.mxu0 0.0
    %647 = vmatprep.subr.mxu0 0.0
    %648 = vmatpush1.msra.mxu0 0.0
    %649 = vmatprep.subr.mxu0 0.0
    %650 = vmatpush1.msra.mxu0 0.0
    %651 = vmatprep.subr.mxu0 0.0
    %652 = vmatpush1.msra.mxu0 0.0
    %653 = vmatprep.subr.mxu0 0.0
    %654 = vmatpush1.msra.mxu0 0.0
    %655 = vmatprep.subr.mxu0 0.0
    %656 = vmatpush1.msra.mxu0 0.0
    %657 = vmatprep.subr.mxu0 0.0
    %658 = vmatpush1.msra.mxu0 0.0
    %659 = vmatprep.subr.mxu0 0.0
    %660 = vmatpush1.msra.mxu0 0.0
    %661 = vmatprep.subr.mxu0 0.0
    %662 = vmatpush1.msra.mxu0 0.0
    %663 = vmatprep.subr.mxu0 0.0
    %664 = vmatpush1.msra.mxu0 0.0
    %665 = vmatprep.subr.mxu0 0.0
    %666 = vmatpush1.msra.mxu0 0.0
    %667 = vmatprep.subr.mxu0 0.0
    %668 = vmatpush1.msra.mxu0 0.0
    %669 = vmatprep.subr.mxu0 0.0
    %670 = vmatpush1.msra.mxu0 0.0
    %671 = vmatprep.subr.mxu0 0.0
    %672 = vmatpush1.msra.mxu0 0.0
    %673 = vmatprep.subr.mxu0 0.0
    %674 = vmatpush1.msra.mxu0 0.0
    %675 = vmatprep.subr.mxu0 0.0
    %676 = vmatpush1.msra.mxu0 0.0
    %677 = vmatprep.subr.mxu0 0.0
    %678 = vmatpush1.msra.mxu0 0.0
    %679 = vmatprep.subr.mxu0 0.0
    %680 = vmatpush1.msra.mxu0 0.0
    %681 = vmatprep.subr.mxu0 0.0
    %682 = vmatpush1.msra.mxu0 0.0
    %683 = vmatprep.subr.mxu0 0.0
    %684 = vmatpush1.msra.mxu0 0.0
    %685 = vmatprep.subr.mxu0 0.0
    %686 = vmatpush1.msra.mxu0 0.0
    %687 = vmatprep.subr.mxu0 0.0
    %688 = vmatpush1.msra.mxu0 0.0
    %689 = vmatprep.subr.mxu0 0.0
    %690 = vmatpush1.msra.mxu0 0.0
    %691 = vmatprep.subr.mxu0 0.0
    %692 = vmatpush1.msra.mxu0 0.0
    %693 = vmatprep.subr.mxu0 0.0
    %694 = vmatpush1.msra.mxu0 0.0
    %695 = vmatprep.subr.mxu0 0.0
    %696 = vmatpush1.msra.mxu0 0.0
    %697 = vmatprep.subr.mxu0 0.0
    %698 = vmatpush1.msra.mxu0 0.0
    %699 = vmatprep.subr.mxu0 0.0
    %700 = vmatpush1.msra.mxu0 0.0
    %701 = vmatprep.subr.mxu0 0.0
    %702 = vmatpush1.msra.mxu0 0.0
    %703 = vmatprep.mubr.f32.mxu0 0.0
    %704 = vmatmul.mubr.f32.gmra.mrb[0].mxu0 %v207
    %v705 = vpop.f32.mrb[0].mxu0
    %v706 = vadd.f32 0.0, %v705
    %v707 = vpop.f32.mrb[0].mxu0
    %708 = vmatprep.mubr.f32.mxu0 0.0
    %709 = vmatmul.mubr.f32.gmra.mrb[0].mxu0 %v210
    %v710 = vpop.f32.mrb[0].mxu0
    %v711 = vadd.f32 0.0, %v710
    %v712 = vpop.f32.mrb[0].mxu0
    %713 = vmatprep.mubr.f32.mxu0 0.0
    %714 = vmatmul.mubr.f32.gmra.mrb[0].mxu0 %v213
    %v715 = vpop.f32.mrb[0].mxu0
    %v716 = vadd.f32 0.0, %v715
    %v717 = vpop.f32.mrb[0].mxu0
    %718 = vmatprep.mubr.f32.mxu0 0.0
    %719 = vmatmul.mubr.f32.gmra.mrb[0].mxu0 %v216
    %v720 = vpop.f32.mrb[0].mxu0
    %v721 = vadd.f32 0.0, %v720
    %v722 = vpop.f32.mrb[0].mxu0
    %723 = vdwg.mxu0
    %724 = vmatprep.subr.mxu0 0.0
    %725 = vmatpush1.msra.mxu0 %v636
    %726 = vmatprep.subr.mxu0 0.0
    %727 = vmatpush1.msra.mxu0 0.0
    %728 = vmatprep.subr.mxu0 0.0
    %729 = vmatpush1.msra.mxu0 0.0
    %730 = vmatprep.subr.mxu0 0.0
    %731 = vmatpush1.msra.mxu0 0.0
    %732 = vmatprep.subr.mxu0 0.0
    %733 = vmatpush1.msra.mxu0 0.0
    %734 = vmatprep.subr.mxu0 0.0
    %735 = vmatpush1.msra.mxu0 0.0
    %736 = vmatprep.subr.mxu0 0.0
    %737 = vmatpush1.msra.mxu0 0.0
    %738 = vmatprep.subr.mxu0 0.0
    %739 = vmatpush1.msra.mxu0 0.0
    %740 = vmatprep.subr.mxu0 0.0
    %741 = vmatpush1.msra.mxu0 0.0
    %742 = vmatprep.subr.mxu0 0.0
    %743 = vmatpush1.msra.mxu0 0.0
    %744 = vmatprep.subr.mxu0 0.0
    %745 = vmatpush1.msra.mxu0 0.0
    %746 = vmatprep.subr.mxu0 0.0
    %747 = vmatpush1.msra.mxu0 0.0
    %748 = vmatprep.subr.mxu0 0.0
    %749 = vmatpush1.msra.mxu0 0.0
    %750 = vmatprep.subr.mxu0 0.0
    %751 = vmatpush1.msra.mxu0 0.0
    %752 = vmatprep.subr.mxu0 0.0
    %753 = vmatpush1.msra.mxu0 0.0
    %754 = vmatprep.subr.mxu0 0.0
    %755 = vmatpush1.msra.mxu0 0.0
    %756 = vmatprep.subr.mxu0 0.0
    %757 = vmatpush1.msra.mxu0 0.0
    %758 = vmatprep.subr.mxu0 0.0
    %759 = vmatpush1.msra.mxu0 0.0
    %760 = vmatprep.subr.mxu0 0.0
    %761 = vmatpush1.msra.mxu0 0.0
    %762 = vmatprep.subr.mxu0 0.0
    %763 = vmatpush1.msra.mxu0 0.0
    %764 = vmatprep.subr.mxu0 0.0
    %765 = vmatpush1.msra.mxu0 0.0
    %766 = vmatprep.subr.mxu0 0.0
    %767 = vmatpush1.msra.mxu0 0.0
    %768 = vmatprep.subr.mxu0 0.0
    %769 = vmatpush1.msra.mxu0 0.0
    %770 = vmatprep.subr.mxu0 0.0
    %771 = vmatpush1.msra.mxu0 0.0
    %772 = vmatprep.subr.mxu0 0.0
    %773 = vmatpush1.msra.mxu0 0.0
    %774 = vmatprep.subr.mxu0 0.0
    %775 = vmatpush1.msra.mxu0 0.0
    %776 = vmatprep.subr.mxu0 0.0
    %777 = vmatpush1.msra.mxu0 0.0
    %778 = vmatprep.subr.mxu0 0.0
    %779 = vmatpush1.msra.mxu0 0.0
    %780 = vmatprep.subr.mxu0 0.0
    %781 = vmatpush1.msra.mxu0 0.0
    %782 = vmatprep.subr.mxu0 0.0
    %783 = vmatpush1.msra.mxu0 0.0
    %784 = vmatprep.subr.mxu0 0.0
    %785 = vmatpush1.msra.mxu0 0.0
    %786 = vmatprep.subr.mxu0 0.0
    %787 = vmatpush1.msra.mxu0 0.0
    %788 = vmatprep.mubr.f32.mxu0 0.0
    %789 = vmatmul.mubr.f32.gmra.mrb[0].mxu0 %v304
    %v790 = vpop.f32.mrb[0].mxu0
    %v791 = vadd.f32 %v706, %v790
    %v792 = vpop.f32.mrb[0].mxu0
    %793 = vmatprep.mubr.f32.mxu0 0.0
    %794 = vmatmul.mubr.f32.gmra.mrb[0].mxu0 %v307
    %v795 = vpop.f32.mrb[0].mxu0
    %v796 = vadd.f32 %v711, %v795
    %v797 = vpop.f32.mrb[0].mxu0
    %798 = vmatprep.mubr.f32.mxu0 0.0
    %799 = vmatmul.mubr.f32.gmra.mrb[0].mxu0 %v310
    %v800 = vpop.f32.mrb[0].mxu0
    %v801 = vadd.f32 %v716, %v800
    %v802 = vpop.f32.mrb[0].mxu0
    %803 = vmatprep.mubr.f32.mxu0 0.0
    %804 = vmatmul.mubr.f32.gmra.mrb[0].mxu0 %v313
    %v805 = vpop.f32.mrb[0].mxu0
    %v806 = vadd.f32 %v721, %v805
    %v807 = vpop.f32.mrb[0].mxu0
    %808 = vdwg.mxu0
    %s809 = scalar_lea.vmem %s3, 40
    %v810 = vld [vmem:[%s809] sm:$0xff]
    %811 = vmatprep.subr.mxu0 0.0
    %812 = vmatpush1.msra.mxu0 %v810
    %813 = vmatprep.subr.mxu0 0.0
    %814 = vmatpush1.msra.mxu0 0.0
    %815 = vmatprep.subr.mxu0 0.0
    %816 = vmatpush1.msra.mxu0 0.0
    %817 = vmatprep.subr.mxu0 0.0
    %818 = vmatpush1.msra.mxu0 0.0
    %819 = vmatprep.subr.mxu0 0.0
    %820 = vmatpush1.msra.mxu0 0.0
    %821 = vmatprep.subr.mxu0 0.0
    %822 = vmatpush1.msra.mxu0 0.0
    %823 = vmatprep.subr.mxu0 0.0
    %824 = vmatpush1.msra.mxu0 0.0
    %825 = vmatprep.subr.mxu0 0.0
    %826 = vmatpush1.msra.mxu0 0.0
    %827 = vmatprep.subr.mxu0 0.0
    %828 = vmatpush1.msra.mxu0 0.0
    %829 = vmatprep.subr.mxu0 0.0
    %830 = vmatpush1.msra.mxu0 0.0
    %831 = vmatprep.subr.mxu0 0.0
    %832 = vmatpush1.msra.mxu0 0.0
    %833 = vmatprep.subr.mxu0 0.0
    %834 = vmatpush1.msra.mxu0 0.0
    %835 = vmatprep.subr.mxu0 0.0
    %836 = vmatpush1.msra.mxu0 0.0
    %837 = vmatprep.subr.mxu0 0.0
    %838 = vmatpush1.msra.mxu0 0.0
    %839 = vmatprep.subr.mxu0 0.0
    %840 = vmatpush1.msra.mxu0 0.0
    %841 = vmatprep.subr.mxu0 0.0
    %842 = vmatpush1.msra.mxu0 0.0
    %843 = vmatprep.subr.mxu0 0.0
    %844 = vmatpush1.msra.mxu0 0.0
    %845 = vmatprep.subr.mxu0 0.0
    %846 = vmatpush1.msra.mxu0 0.0
    %847 = vmatprep.subr.mxu0 0.0
    %848 = vmatpush1.msra.mxu0 0.0
    %849 = vmatprep.subr.mxu0 0.0
    %850 = vmatpush1.msra.mxu0 0.0
    %851 = vmatprep.subr.mxu0 0.0
    %852 = vmatpush1.msra.mxu0 0.0
    %853 = vmatprep.subr.mxu0 0.0
    %854 = vmatpush1.msra.mxu0 0.0
    %855 = vmatprep.subr.mxu0 0.0
    %856 = vmatpush1.msra.mxu0 0.0
    %857 = vmatprep.subr.mxu0 0.0
    %858 = vmatpush1.msra.mxu0 0.0
    %859 = vmatprep.subr.mxu0 0.0
    %860 = vmatpush1.msra.mxu0 0.0
    %861 = vmatprep.subr.mxu0 0.0
    %862 = vmatpush1.msra.mxu0 0.0
    %863 = vmatprep.subr.mxu0 0.0
    %864 = vmatpush1.msra.mxu0 0.0
    %865 = vmatprep.subr.mxu0 0.0
    %866 = vmatpush1.msra.mxu0 0.0
    %867 = vmatprep.subr.mxu0 0.0
    %868 = vmatpush1.msra.mxu0 0.0
    %869 = vmatprep.subr.mxu0 0.0
    %870 = vmatpush1.msra.mxu0 0.0
    %871 = vmatprep.subr.mxu0 0.0
    %872 = vmatpush1.msra.mxu0 0.0
    %873 = vmatprep.subr.mxu0 0.0
    %874 = vmatpush1.msra.mxu0 0.0
    %875 = vmatprep.mubr.f32.mxu0 0.0
    %876 = vmatmul.mubr.f32.gmra.mrb[0].mxu0 %v403
    %v877 = vpop.f32.mrb[0].mxu0
    %v878 = vadd.f32 0.0, %v877
    %v879 = vpop.f32.mrb[0].mxu0
    %880 = vmatprep.mubr.f32.mxu0 0.0
    %881 = vmatmul.mubr.f32.gmra.mrb[0].mxu0 %v406
    %v882 = vpop.f32.mrb[0].mxu0
    %v883 = vadd.f32 0.0, %v882
    %v884 = vpop.f32.mrb[0].mxu0
    %885 = vmatprep.mubr.f32.mxu0 0.0
    %886 = vmatmul.mubr.f32.gmra.mrb[0].mxu0 %v409
    %v887 = vpop.f32.mrb[0].mxu0
    %v888 = vadd.f32 0.0, %v887
    %v889 = vpop.f32.mrb[0].mxu0
    %890 = vmatprep.mubr.f32.mxu0 0.0
    %891 = vmatmul.mubr.f32.gmra.mrb[0].mxu0 %v412
    %v892 = vpop.f32.mrb[0].mxu0
    %v893 = vadd.f32 0.0, %v892
    %v894 = vpop.f32.mrb[0].mxu0
    %895 = vdwg.mxu0
    %v896 = vadd.f32 %v791, %v878
    %v897 = vadd.f32 %v796, %v883
    %v898 = vadd.f32 %v801, %v888
    %v899 = vadd.f32 %v806, %v893
    %s900 = scalar_lea.vmem %s4, 1
    %v901 = vld [vmem:[%s900] sm:$0x1]
    %v903 = vlaneseq
    %v904 = vshrl.u32 %v903, 7
    %v905 = vsub.s32 0, %v904
    %v906 = vrot.slane %v901, %v905
    %v908 = vadd.f32 %v896, %v906
    %v909 = vadd.f32 %v897, %v906
    %v910 = vadd.f32 %v898, %v906
    %v911 = vadd.f32 %v899, %v906
    %v912 = vmax.f32 %v908, 0.0
    %v913 = vmax.f32 %v909, 0.0
    %v914 = vmax.f32 %v910, 0.0
    %v915 = vmax.f32 %v911, 0.0
    %s916 = scalar_lea.vmem %s5, 8
    %v917 = vld [vmem:[%s916] sm:$0xff]
    %v918 = vsel %vm178, %v912, 0.0
    %v919 = vsel %vm178, %v913, 0.0
    %v920 = vadd.f32 %v918, %v919
    %v921 = vrot.slane %v920, 4
    %v922 = vadd.f32 %v920, %v921
    %v923 = vrot.slane %v922, 2
    %v924 = vadd.f32 %v922, %v923
    %v925 = vrot.slane %v924, 1
    %v926 = vadd.f32 %v924, %v925
    %v927 = vsel %vm178, %v914, 0.0
    %v928 = vsel %vm178, %v915, 0.0
    %v929 = vadd.f32 %v927, %v928
    %v930 = vrot.slane %v929, 4
    %v931 = vadd.f32 %v929, %v930
    %v932 = vrot.slane %v931, 2
    %v933 = vadd.f32 %v931, %v932
    %v934 = vrot.slane %v933, 1
    %v935 = vadd.f32 %v933, %v934
    %v938 = vsel %vm539, %v935, %v926
    %v939 = vsel %vm178, %v938, 0
    %941 = vmatprep.subr.mxu0 0.0
    %942 = vmatpush1.msra.mxu0 %v917
    %943 = vmatprep.subr.mxu0 0.0
    %944 = vmatpush1.msra.mxu0 0.0
    %945 = vmatprep.subr.mxu0 0.0
    %946 = vmatpush1.msra.mxu0 0.0
    %947 = vmatprep.subr.mxu0 0.0
    %948 = vmatpush1.msra.mxu0 0.0
    %949 = vmatprep.subr.mxu0 0.0
    %950 = vmatpush1.msra.mxu0 0.0
    %951 = vmatprep.subr.mxu0 0.0
    %952 = vmatpush1.msra.mxu0 0.0
    %953 = vmatprep.subr.mxu0 0.0
    %954 = vmatpush1.msra.mxu0 0.0
    %955 = vmatprep.subr.mxu0 0.0
    %956 = vmatpush1.msra.mxu0 0.0
    %957 = vmatprep.subr.mxu0 0.0
    %958 = vmatpush1.msra.mxu0 0.0
    %959 = vmatprep.subr.mxu0 0.0
    %960 = vmatpush1.msra.mxu0 0.0
    %961 = vmatprep.subr.mxu0 0.0
    %962 = vmatpush1.msra.mxu0 0.0
    %963 = vmatprep.subr.mxu0 0.0
    %964 = vmatpush1.msra.mxu0 0.0
    %965 = vmatprep.subr.mxu0 0.0
    %966 = vmatpush1.msra.mxu0 0.0
    %967 = vmatprep.subr.mxu0 0.0
    %968 = vmatpush1.msra.mxu0 0.0
    %969 = vmatprep.subr.mxu0 0.0
    %970 = vmatpush1.msra.mxu0 0.0
    %971 = vmatprep.subr.mxu0 0.0
    %972 = vmatpush1.msra.mxu0 0.0
    %973 = vmatprep.subr.mxu0 0.0
    %974 = vmatpush1.msra.mxu0 0.0
    %975 = vmatprep.subr.mxu0 0.0
    %976 = vmatpush1.msra.mxu0 0.0
    %977 = vmatprep.subr.mxu0 0.0
    %978 = vmatpush1.msra.mxu0 0.0
    %979 = vmatprep.subr.mxu0 0.0
    %980 = vmatpush1.msra.mxu0 0.0
    %981 = vmatprep.subr.mxu0 0.0
    %982 = vmatpush1.msra.mxu0 0.0
    %983 = vmatprep.subr.mxu0 0.0
    %984 = vmatpush1.msra.mxu0 0.0
    %985 = vmatprep.subr.mxu0 0.0
    %986 = vmatpush1.msra.mxu0 0.0
    %987 = vmatprep.subr.mxu0 0.0
    %988 = vmatpush1.msra.mxu0 0.0
    %989 = vmatprep.subr.mxu0 0.0
    %990 = vmatpush1.msra.mxu0 0.0
    %991 = vmatprep.subr.mxu0 0.0
    %992 = vmatpush1.msra.mxu0 0.0
    %993 = vmatprep.subr.mxu0 0.0
    %994 = vmatpush1.msra.mxu0 0.0
    %995 = vmatprep.subr.mxu0 0.0
    %996 = vmatpush1.msra.mxu0 0.0
    %997 = vmatprep.subr.mxu0 0.0
    %998 = vmatpush1.msra.mxu0 0.0
    %999 = vmatprep.subr.mxu0 0.0
    %1000 = vmatpush1.msra.mxu0 0.0
    %1001 = vmatprep.subr.mxu0 0.0
    %1002 = vmatpush1.msra.mxu0 0.0
    %1003 = vmatprep.subr.mxu0 0.0
    %1004 = vmatpush1.msra.mxu0 0.0
    %1005 = vmatprep.mubr.f32.mxu0 0.0
    %1006 = vmatmul.mubr.f32.gmra.mrb[0].mxu0 %v939
    %v1007 = vpop.f32.mrb[0].mxu0
    %v1008 = vadd.f32 0.0, %v1007
    %v1009 = vpop.f32.mrb[0].mxu0
    %1010 = vdwg.mxu0
    %v1011 = vmul.f32 %v1008, 0.0625
    %s1012 = scalar_lea.vmem %s6, 1
    %v1013 = vld [vmem:[%s1012] sm:$0x1]
    %v1015 = vlaneseq
    %v1016 = vshrl.u32 %v1015, 7
    %v1017 = vsub.s32 0, %v1016
    %v1018 = vrot.slane %v1013, %v1017
    %v1020 = vadd.f32 %v1011, %v1018
    %v1021 = vsel %vm622, %v1020, -inf
    %1022 = vmax.xlane.f32.xlu0 %v1021
    %v1023 = vpop.xlane.xlu0 %1022
    %v1024 = vsub.f32 %v1020, %v1023
    %v1025 = vmul.f32 %v1024, 1.442695
    %v1026 = vpow.pop %v1025
    %v1027 = vsel %vm622, %v1026, 0.0
    %1028 = vadd.xlane.f32.xlu0 %v1027
    %v1029 = vpop.xlane.xlu0 %1028
    %v1030 = vrcp.pop %v1029
    %v1031 = vmul.f32 %v1026, %v1030
    %v1032 = vadd.f32 %v634, %v1031
    %1033 = vst.msk [vmem:[#allocation4] sm:$0x3] %vm622, %v1032
    // Predicated region
    $region30: #{blueprint_forward.1} parent=1 // pred_check
      _
    $region31: #{blueprint_forward.1} parent=1 // pred_check_branch
      %1035 = sbr.rel (0) target = $region33
    $region32: #{blueprint_forward.1} parent=1 // pred_region
      %s1037 = ssub.s32 32, 32
      %1038 = vsyncadd [#allocation5], %s1037
      %s1040 = sshll.u32 [#allocation4], 4
      %s1041 = int_to_ptr.vmem [resolvable:$true] %s1040
      %1043 = dma.vmem_to_hbm [thread:$0]  %s1041, 32, %s7, [#allocation5]
    $region33: #{blueprint_forward.1} parent=1 // pred_fallthru
      _
    // Predicated region
    $region34: #{blueprint_forward.1} parent=1 // pred_check
      _
    $region35: #{blueprint_forward.1} parent=1 // pred_check_branch
      %1045 = sbr.rel (0) target = $region37
    $region36: #{blueprint_forward.1} parent=1 // pred_region
      %1046 = dma.done [#allocation5], 32
    $region37: #{blueprint_forward.1} parent=1 // pred_fallthru
      _
    %1047 = vsyncpa [#allocation5], 1

</llo_original>
